<compile_context>
chip_gen: v5e
topology: v5e:2x2
jax: 0.10.0
libtpu: 0.0.40
codegen_flags: <defaults>
</compile_context>

<pallas_src>
import jax
import jax.numpy as jnp
from jax.experimental import pallas as pl
from jax.experimental.pallas import tpu as pltpu

# ---- model config (mirrors the PyTorch module) ----
batch_size = 1
hidden_size = 4
num_layers = 1
input_size = 4
seq_len = 8  # small sequence length for the example input

# ---- TPU-friendly padded sizes ----
B_PAD = 8     # sublane multiple
I_PAD = 128   # lane multiple
H_PAD = 128   # lane multiple


def rnn_kernel(x_ref, w_ref, b_ref, out_ref):
    """Single-shot RNN over the whole sequence.

    x_ref  : (T, B_PAD, I_PAD)        all input time steps (VMEM resident)
    w_ref  : (I_PAD + H_PAD, H_PAD)   fused [W_ih^T ; W_hh^T] (padded)
    b_ref  : (B_PAD, H_PAD)           b_ih + b_hh pre-broadcast over batch
    out_ref: (T, B_PAD, H_PAD)        all outputs (one lane-dense writeback)
    """
    T = x_ref.shape[0]

    # Hoisted loop invariants: resident fused RHS and bias broadcast.
    w = w_ref[...]          # (256, 128)
    bias = b_ref[...]       # (B_PAD, H_PAD)

    # h0 = 0, matching `hidden = torch.zeros(...)` in forward().
    # Padded hidden lanes stay exactly 0 (zero weight cols + zero bias lanes).
    h = jnp.zeros((x_ref.shape[1], w_ref.shape[1]), jnp.float32)

    # T is tiny and static: fully unrolled loop with static indices lets the
    # scheduler overlap the tanh (EUP) and store of step t with the matmul of
    # step t+1, and fuses the two per-step dots into one K=256 MXU pass.
    for t in range(T):
        xh = jnp.concatenate([x_ref[t], h], axis=-1)   # (B_PAD, I_PAD + H_PAD)
        h = jnp.tanh(
            jnp.dot(xh, w, preferred_element_type=jnp.float32) + bias
        )
        out_ref[t] = h.astype(out_ref.dtype)


def rnn_forward(x, w_ih, w_hh, b_ih, b_hh):
    """x: (T, B, I) float32 -> out: (T*B, H) float32 (matches out.view(-1, H))."""
    T, B, I = x.shape
    H = w_ih.shape[0]

    # ---- pad to TPU tile sizes and fuse weights / bias (plain-JAX glue) ----
    x_p = jnp.zeros((T, B_PAD, I_PAD), jnp.float32).at[:, :B, :I].set(x)
    w_fused = (
        jnp.zeros((I_PAD + H_PAD, H_PAD), jnp.float32)
        .at[:I, :H].set(w_ih.T)                    # input -> hidden block
        .at[I_PAD:I_PAD + H, :H].set(w_hh.T)       # hidden -> hidden block
    )
    bias_b = jnp.zeros((B_PAD, H_PAD), jnp.float32).at[:, :H].set(b_ih + b_hh)

    out_p = pl.pallas_call(
        rnn_kernel,
        out_shape=jax.ShapeDtypeStruct((T, B_PAD, H_PAD), jnp.float32),
        grid=(1,),  # single invocation: time loop lives inside the kernel
        in_specs=[
            pl.BlockSpec((T, B_PAD, I_PAD), lambda i: (0, 0, 0)),
            pl.BlockSpec((I_PAD + H_PAD, H_PAD), lambda i: (0, 0)),
            pl.BlockSpec((B_PAD, H_PAD), lambda i: (0, 0)),
        ],
        out_specs=pl.BlockSpec((T, B_PAD, H_PAD), lambda i: (0, 0, 0)),
        compiler_params=pltpu.CompilerParams(
            dimension_semantics=("arbitrary",),
        ),
    )(x_p, w_fused, bias_b)

    out = out_p[:, :B, :H]          # strip padding -> (T, B, H)
    return out.reshape(-1, H)       # out.view(-1, hidden_size)


def rnn_reference(x, w_ih, w_hh, b_ih, b_hh):
    """Pure-JAX reference of torch.nn.RNN (tanh, single layer, h0=0)."""
    T, B, _ = x.shape
    H = w_ih.shape[0]
    h = jnp.zeros((B, H), jnp.float32)

    def step(h, x_t):
        h_new = jnp.tanh(x_t @ w_ih.T + b_ih + h @ w_hh.T + b_hh)
        return h_new, h_new

    _, outs = jax.lax.scan(step, h, x)
    return outs.reshape(-1, H)


if __name__ == "__main__":
    key = jax.random.PRNGKey(0)
    k_x, k_wih, k_whh, k_bih, k_bhh = jax.random.split(key, 5)

    # Deterministic parameter init (PyTorch RNN uses U(-1/sqrt(H), 1/sqrt(H))).
    bound = 1.0 / jnp.sqrt(jnp.float32(hidden_size))
    w_ih = jax.random.uniform(k_wih, (hidden_size, input_size), jnp.float32, -bound, bound)
    w_hh = jax.random.uniform(k_whh, (hidden_size, hidden_size), jnp.float32, -bound, bound)
    b_ih = jax.random.uniform(k_bih, (hidden_size,), jnp.float32, -bound, bound)
    b_hh = jax.random.uniform(k_bhh, (hidden_size,), jnp.float32, -bound, bound)

    # Example input: (seq_len, batch, input_size), PyTorch default (batch_first=False).
    x = jax.random.normal(k_x, (seq_len, batch_size, input_size), jnp.float32)

    out = rnn_forward(x, w_ih, w_hh, b_ih, b_hh)
    out = jax.block_until_ready(out)

    ref = rnn_reference(x, w_ih, w_hh, b_ih, b_hh)
    assert out.shape == (seq_len * batch_size, hidden_size), out.shape
    assert jnp.allclose(out, ref, atol=1e-5, rtol=1e-5), "mismatch vs reference"

    print("KERNEL_OK")
</pallas_src>

<mosaic_0001>
module attributes {stable_mosaic.version = 11 : i64} {
  func.func @rnn_kernel(%arg0: i32, %arg1: memref<8x8x128xf32, #tpu.memory_space<vmem>>, %arg2: memref<256x128xf32, #tpu.memory_space<vmem>>, %arg3: memref<8x128xf32, #tpu.memory_space<vmem>>, %arg4: memref<8x8x128xf32, #tpu.memory_space<vmem>>) attributes {dimension_semantics = [#tpu.dimension_semantics<arbitrary>], iteration_bounds = array<i64: 1>, scalar_prefetch = 0 : i64, scratch_operands = 0 : i64, tpu.core_type = #tpu.core_type<tc>, window_params = [{pipeline_mode = #tpu.pipeline_mode<synchronous>, transform_indices = @transform_0, window_bounds = array<i64: 8, 8, 128>}, {pipeline_mode = #tpu.pipeline_mode<synchronous>, transform_indices = @transform_1, window_bounds = array<i64: 256, 128>}, {pipeline_mode = #tpu.pipeline_mode<synchronous>, transform_indices = @transform_2, window_bounds = array<i64: 8, 128>}, {pipeline_mode = #tpu.pipeline_mode<synchronous>, transform_indices = @transform_3, window_bounds = array<i64: 8, 8, 128>}]} {
    %c0 = arith.constant 0 : index
    %c0_0 = arith.constant 0 : index
    %0 = vector.load %arg2[%c0, %c0_0] : memref<256x128xf32, #tpu.memory_space<vmem>>, vector<256x128xf32>
    %c0_1 = arith.constant 0 : index
    %c0_2 = arith.constant 0 : index
    %1 = vector.load %arg3[%c0_1, %c0_2] : memref<8x128xf32, #tpu.memory_space<vmem>>, vector<8x128xf32>
    %cst = arith.constant 0.000000e+00 : f32
    %2 = vector.broadcast %cst : f32 to vector<8x128xf32>
    %c0_3 = arith.constant 0 : index
    %c0_4 = arith.constant 0 : index
    %c0_5 = arith.constant 0 : index
    %3 = vector.load %arg1[%c0_3, %c0_4, %c0_5] : memref<8x8x128xf32, #tpu.memory_space<vmem>>, vector<1x8x128xf32>
    %4 = vector.shape_cast %3 : vector<1x8x128xf32> to vector<8x128xf32>
    %5 = tpu.concatenate %4, %2 in 1 : vector<8x128xf32>, vector<8x128xf32> -> vector<8x256xf32>
    %cst_6 = arith.constant dense<0.000000e+00> : vector<8x128xf32>
    %6 = tpu.matmul %5, %0, %cst_6 {dimension_numbers = #tpu.dot_dimension_numbers<[1], [0], [0], [1], [0, 0, 1, 1], [], []>} : vector<8x256xf32>, vector<256x128xf32>, vector<8x128xf32> -> vector<8x128xf32>
    %7 = arith.addf %6, %1 : vector<8x128xf32>
    %8 = math.tanh %7 : vector<8x128xf32>
    %c0_7 = arith.constant 0 : index
    %c0_8 = arith.constant 0 : index
    %c0_9 = arith.constant 0 : index
    %9 = vector.load %arg4[%c0_7, %c0_8, %c0_9] : memref<8x8x128xf32, #tpu.memory_space<vmem>>, vector<1x8x128xf32>
    %10 = vector.shape_cast %9 : vector<1x8x128xf32> to vector<8x128xf32>
    %11 = vector.shape_cast %8 : vector<8x128xf32> to vector<1x8x128xf32>
    tpu.vector_store %arg4[%c0_7, %c0_8, %c0_9], %11 {strides = array<i32>} : memref<8x8x128xf32, #tpu.memory_space<vmem>>, vector<1x8x128xf32>,
    %c1 = arith.constant 1 : index
    %c0_10 = arith.constant 0 : index
    %c0_11 = arith.constant 0 : index
    %12 = vector.load %arg1[%c1, %c0_10, %c0_11] : memref<8x8x128xf32, #tpu.memory_space<vmem>>, vector<1x8x128xf32>
    %13 = vector.shape_cast %12 : vector<1x8x128xf32> to vector<8x128xf32>
    %14 = tpu.concatenate %13, %8 in 1 : vector<8x128xf32>, vector<8x128xf32> -> vector<8x256xf32>
    %cst_12 = arith.constant dense<0.000000e+00> : vector<8x128xf32>
    %15 = tpu.matmul %14, %0, %cst_12 {dimension_numbers = #tpu.dot_dimension_numbers<[1], [0], [0], [1], [0, 0, 1, 1], [], []>} : vector<8x256xf32>, vector<256x128xf32>, vector<8x128xf32> -> vector<8x128xf32>
    %16 = arith.addf %15, %1 : vector<8x128xf32>
    %17 = math.tanh %16 : vector<8x128xf32>
    %c1_13 = arith.constant 1 : index
    %c0_14 = arith.constant 0 : index
    %c0_15 = arith.constant 0 : index
    %18 = vector.load %arg4[%c1_13, %c0_14, %c0_15] : memref<8x8x128xf32, #tpu.memory_space<vmem>>, vector<1x8x128xf32>
    %19 = vector.shape_cast %18 : vector<1x8x128xf32> to vector<8x128xf32>
    %20 = vector.shape_cast %17 : vector<8x128xf32> to vector<1x8x128xf32>
    tpu.vector_store %arg4[%c1_13, %c0_14, %c0_15], %20 {strides = array<i32>} : memref<8x8x128xf32, #tpu.memory_space<vmem>>, vector<1x8x128xf32>,
    %c2 = arith.constant 2 : index
    %c0_16 = arith.constant 0 : index
    %c0_17 = arith.constant 0 : index
    %21 = vector.load %arg1[%c2, %c0_16, %c0_17] : memref<8x8x128xf32, #tpu.memory_space<vmem>>, vector<1x8x128xf32>
    %22 = vector.shape_cast %21 : vector<1x8x128xf32> to vector<8x128xf32>
    %23 = tpu.concatenate %22, %17 in 1 : vector<8x128xf32>, vector<8x128xf32> -> vector<8x256xf32>
    %cst_18 = arith.constant dense<0.000000e+00> : vector<8x128xf32>
    %24 = tpu.matmul %23, %0, %cst_18 {dimension_numbers = #tpu.dot_dimension_numbers<[1], [0], [0], [1], [0, 0, 1, 1], [], []>} : vector<8x256xf32>, vector<256x128xf32>, vector<8x128xf32> -> vector<8x128xf32>
    %25 = arith.addf %24, %1 : vector<8x128xf32>
    %26 = math.tanh %25 : vector<8x128xf32>
    %c2_19 = arith.constant 2 : index
    %c0_20 = arith.constant 0 : index
    %c0_21 = arith.constant 0 : index
    %27 = vector.load %arg4[%c2_19, %c0_20, %c0_21] : memref<8x8x128xf32, #tpu.memory_space<vmem>>, vector<1x8x128xf32>
    %28 = vector.shape_cast %27 : vector<1x8x128xf32> to vector<8x128xf32>
    %29 = vector.shape_cast %26 : vector<8x128xf32> to vector<1x8x128xf32>
    tpu.vector_store %arg4[%c2_19, %c0_20, %c0_21], %29 {strides = array<i32>} : memref<8x8x128xf32, #tpu.memory_space<vmem>>, vector<1x8x128xf32>,
    %c3 = arith.constant 3 : index
    %c0_22 = arith.constant 0 : index
    %c0_23 = arith.constant 0 : index
    %30 = vector.load %arg1[%c3, %c0_22, %c0_23] : memref<8x8x128xf32, #tpu.memory_space<vmem>>, vector<1x8x128xf32>
    %31 = vector.shape_cast %30 : vector<1x8x128xf32> to vector<8x128xf32>
    %32 = tpu.concatenate %31, %26 in 1 : vector<8x128xf32>, vector<8x128xf32> -> vector<8x256xf32>
    %cst_24 = arith.constant dense<0.000000e+00> : vector<8x128xf32>
    %33 = tpu.matmul %32, %0, %cst_24 {dimension_numbers = #tpu.dot_dimension_numbers<[1], [0], [0], [1], [0, 0, 1, 1], [], []>} : vector<8x256xf32>, vector<256x128xf32>, vector<8x128xf32> -> vector<8x128xf32>
    %34 = arith.addf %33, %1 : vector<8x128xf32>
    %35 = math.tanh %34 : vector<8x128xf32>
    %c3_25 = arith.constant 3 : index
    %c0_26 = arith.constant 0 : index
    %c0_27 = arith.constant 0 : index
    %36 = vector.load %arg4[%c3_25, %c0_26, %c0_27] : memref<8x8x128xf32, #tpu.memory_space<vmem>>, vector<1x8x128xf32>
    %37 = vector.shape_cast %36 : vector<1x8x128xf32> to vector<8x128xf32>
    %38 = vector.shape_cast %35 : vector<8x128xf32> to vector<1x8x128xf32>
    tpu.vector_store %arg4[%c3_25, %c0_26, %c0_27], %38 {strides = array<i32>} : memref<8x8x128xf32, #tpu.memory_space<vmem>>, vector<1x8x128xf32>,
    %c4 = arith.constant 4 : index
    %c0_28 = arith.constant 0 : index
    %c0_29 = arith.constant 0 : index
    %39 = vector.load %arg1[%c4, %c0_28, %c0_29] : memref<8x8x128xf32, #tpu.memory_space<vmem>>, vector<1x8x128xf32>
    %40 = vector.shape_cast %39 : vector<1x8x128xf32> to vector<8x128xf32>
    %41 = tpu.concatenate %40, %35 in 1 : vector<8x128xf32>, vector<8x128xf32> -> vector<8x256xf32>
    %cst_30 = arith.constant dense<0.000000e+00> : vector<8x128xf32>
    %42 = tpu.matmul %41, %0, %cst_30 {dimension_numbers = #tpu.dot_dimension_numbers<[1], [0], [0], [1], [0, 0, 1, 1], [], []>} : vector<8x256xf32>, vector<256x128xf32>, vector<8x128xf32> -> vector<8x128xf32>
    %43 = arith.addf %42, %1 : vector<8x128xf32>
    %44 = math.tanh %43 : vector<8x128xf32>
    %c4_31 = arith.constant 4 : index
    %c0_32 = arith.constant 0 : index
    %c0_33 = arith.constant 0 : index
    %45 = vector.load %arg4[%c4_31, %c0_32, %c0_33] : memref<8x8x128xf32, #tpu.memory_space<vmem>>, vector<1x8x128xf32>
    %46 = vector.shape_cast %45 : vector<1x8x128xf32> to vector<8x128xf32>
    %47 = vector.shape_cast %44 : vector<8x128xf32> to vector<1x8x128xf32>
    tpu.vector_store %arg4[%c4_31, %c0_32, %c0_33], %47 {strides = array<i32>} : memref<8x8x128xf32, #tpu.memory_space<vmem>>, vector<1x8x128xf32>,
    %c5 = arith.constant 5 : index
    %c0_34 = arith.constant 0 : index
    %c0_35 = arith.constant 0 : index
    %48 = vector.load %arg1[%c5, %c0_34, %c0_35] : memref<8x8x128xf32, #tpu.memory_space<vmem>>, vector<1x8x128xf32>
    %49 = vector.shape_cast %48 : vector<1x8x128xf32> to vector<8x128xf32>
    %50 = tpu.concatenate %49, %44 in 1 : vector<8x128xf32>, vector<8x128xf32> -> vector<8x256xf32>
    %cst_36 = arith.constant dense<0.000000e+00> : vector<8x128xf32>
    %51 = tpu.matmul %50, %0, %cst_36 {dimension_numbers = #tpu.dot_dimension_numbers<[1], [0], [0], [1], [0, 0, 1, 1], [], []>} : vector<8x256xf32>, vector<256x128xf32>, vector<8x128xf32> -> vector<8x128xf32>
    %52 = arith.addf %51, %1 : vector<8x128xf32>
    %53 = math.tanh %52 : vector<8x128xf32>
    %c5_37 = arith.constant 5 : index
    %c0_38 = arith.constant 0 : index
    %c0_39 = arith.constant 0 : index
    %54 = vector.load %arg4[%c5_37, %c0_38, %c0_39] : memref<8x8x128xf32, #tpu.memory_space<vmem>>, vector<1x8x128xf32>
    %55 = vector.shape_cast %54 : vector<1x8x128xf32> to vector<8x128xf32>
    %56 = vector.shape_cast %53 : vector<8x128xf32> to vector<1x8x128xf32>
    tpu.vector_store %arg4[%c5_37, %c0_38, %c0_39], %56 {strides = array<i32>} : memref<8x8x128xf32, #tpu.memory_space<vmem>>, vector<1x8x128xf32>,
    %c6 = arith.constant 6 : index
    %c0_40 = arith.constant 0 : index
    %c0_41 = arith.constant 0 : index
    %57 = vector.load %arg1[%c6, %c0_40, %c0_41] : memref<8x8x128xf32, #tpu.memory_space<vmem>>, vector<1x8x128xf32>
    %58 = vector.shape_cast %57 : vector<1x8x128xf32> to vector<8x128xf32>
    %59 = tpu.concatenate %58, %53 in 1 : vector<8x128xf32>, vector<8x128xf32> -> vector<8x256xf32>
    %cst_42 = arith.constant dense<0.000000e+00> : vector<8x128xf32>
    %60 = tpu.matmul %59, %0, %cst_42 {dimension_numbers = #tpu.dot_dimension_numbers<[1], [0], [0], [1], [0, 0, 1, 1], [], []>} : vector<8x256xf32>, vector<256x128xf32>, vector<8x128xf32> -> vector<8x128xf32>
    %61 = arith.addf %60, %1 : vector<8x128xf32>
    %62 = math.tanh %61 : vector<8x128xf32>
    %c6_43 = arith.constant 6 : index
    %c0_44 = arith.constant 0 : index
    %c0_45 = arith.constant 0 : index
    %63 = vector.load %arg4[%c6_43, %c0_44, %c0_45] : memref<8x8x128xf32, #tpu.memory_space<vmem>>, vector<1x8x128xf32>
    %64 = vector.shape_cast %63 : vector<1x8x128xf32> to vector<8x128xf32>
    %65 = vector.shape_cast %62 : vector<8x128xf32> to vector<1x8x128xf32>
    tpu.vector_store %arg4[%c6_43, %c0_44, %c0_45], %65 {strides = array<i32>} : memref<8x8x128xf32, #tpu.memory_space<vmem>>, vector<1x8x128xf32>,
    %c7 = arith.constant 7 : index
    %c0_46 = arith.constant 0 : index
    %c0_47 = arith.constant 0 : index
    %66 = vector.load %arg1[%c7, %c0_46, %c0_47] : memref<8x8x128xf32, #tpu.memory_space<vmem>>, vector<1x8x128xf32>
    %67 = vector.shape_cast %66 : vector<1x8x128xf32> to vector<8x128xf32>
    %68 = tpu.concatenate %67, %62 in 1 : vector<8x128xf32>, vector<8x128xf32> -> vector<8x256xf32>
    %cst_48 = arith.constant dense<0.000000e+00> : vector<8x128xf32>
    %69 = tpu.matmul %68, %0, %cst_48 {dimension_numbers = #tpu.dot_dimension_numbers<[1], [0], [0], [1], [0, 0, 1, 1], [], []>} : vector<8x256xf32>, vector<256x128xf32>, vector<8x128xf32> -> vector<8x128xf32>
    %70 = arith.addf %69, %1 : vector<8x128xf32>
    %71 = math.tanh %70 : vector<8x128xf32>
    %c7_49 = arith.constant 7 : index
    %c0_50 = arith.constant 0 : index
    %c0_51 = arith.constant 0 : index
    %72 = vector.load %arg4[%c7_49, %c0_50, %c0_51] : memref<8x8x128xf32, #tpu.memory_space<vmem>>, vector<1x8x128xf32>
    %73 = vector.shape_cast %72 : vector<1x8x128xf32> to vector<8x128xf32>
    %74 = vector.shape_cast %71 : vector<8x128xf32> to vector<1x8x128xf32>
    tpu.vector_store %arg4[%c7_49, %c0_50, %c0_51], %74 {strides = array<i32>} : memref<8x8x128xf32, #tpu.memory_space<vmem>>, vector<1x8x128xf32>,
    return
  }
  func.func @transform_0(%arg0: i32) -> (i32, i32, i32) {
    %c0_i32 = arith.constant 0 : i32
    %c0_i32_0 = arith.constant 0 : i32
    %c0_i32_1 = arith.constant 0 : i32
    %c0_i32_2 = arith.constant 0 : i32
    return %c0_i32, %c0_i32_0, %c0_i32_1 : i32, i32, i32
  }
  func.func @transform_1(%arg0: i32) -> (i32, i32) {
    %c0_i32 = arith.constant 0 : i32
    %c0_i32_0 = arith.constant 0 : i32
    %c0_i32_1 = arith.constant 0 : i32
    return %c0_i32, %c0_i32_0 : i32, i32
  }
  func.func @transform_2(%arg0: i32) -> (i32, i32) {
    %c0_i32 = arith.constant 0 : i32
    %c0_i32_0 = arith.constant 0 : i32
    %c0_i32_1 = arith.constant 0 : i32
    return %c0_i32, %c0_i32_0 : i32, i32
  }
  func.func @transform_3(%arg0: i32) -> (i32, i32, i32) {
    %c0_i32 = arith.constant 0 : i32
    %c0_i32_0 = arith.constant 0 : i32
    %c0_i32_1 = arith.constant 0 : i32
    %c0_i32_2 = arith.constant 0 : i32
    return %c0_i32, %c0_i32_0, %c0_i32_1 : i32, i32, i32
  }
}

</mosaic_0001>

<llo_original>
// kernel: tpu_custom_call.1
$region0: #{tpu_custom_call.1}
  #allocation0 [shape = 'u32[]', space=smem, size = 0x4, offset = 0x4, fixed_abs, tag = 'smem constant byte address 0x4 - core index']
  #allocation1 [shape = 'u32[72,128]{1,0:T(1,128)}', space=vmem, size = 0x9000, scoped, tag = 'internal scratch']
  %s0 = inlined_call_operand.hbm [shape: f32[8,8,128], index: 0, kind: input, shape index: {}]
  %s1 = inlined_call_operand.hbm [shape: f32[256,128], index: 1, kind: input, shape index: {}]
  %s2 = inlined_call_operand.hbm [shape: f32[8,128], index: 2, kind: input, shape index: {}]
  %s3 = inlined_call_operand.hbm [shape: f32[8,8,128], index: 3, kind: output, shape index: {}]
  %s4 = sld [smem:[#allocation0]]
  $region34: #{tpu_custom_call.1} parent=0
    _
  %s6 = ssub.s32 1, %s4
  %s7 = scalar_select 0, %s6, %s4
  $region1: #{tpu_custom_call.1} parent=0
    #allocation2 [shape = 'u8[32768]{0}', space=vmem, size = 0x8000, scoped, tag = 'input window, operand 0, single buffered']
    #allocation3 [shape = 's32[1]{0}', space=sflag, size = 0x4, scoped, tag = 'scoped memory for tpu_custom_call.1']
    #allocation4 [shape = 's32[1]{0}', space=sflag, size = 0x4, scoped, tag = 'scoped memory for tpu_custom_call.1']
    #allocation5 [shape = 'u8[131072]{0}', space=vmem, size = 0x20000, scoped, tag = 'input window, operand 1, single buffered']
    #allocation6 [shape = 's32[1]{0}', space=sflag, size = 0x4, scoped, tag = 'scoped memory for tpu_custom_call.1']
    #allocation7 [shape = 'u8[4096]{0}', space=vmem, size = 0x1000, scoped, tag = 'input window, operand 2, single buffered']
    #allocation8 [shape = 'u8[32768]{0}', space=vmem, size = 0x8000, scoped, tag = 'output window, operand 0, single buffered']
    %8 = vsyncpa [#allocation3], 0
    %9 = vsyncpa [#allocation6], 0
    %10 = vsyncpa [#allocation4], 0
    // Predicated region
    $region2: #{tpu_custom_call.1} parent=1 // pred_check
      _
    $region3: #{tpu_custom_call.1} parent=1 // pred_check_branch
      %12 = sbr.rel (0) target = $region5
    $region4: #{tpu_custom_call.1} parent=1 // pred_region
      %14 = vsyncadd [#allocation3], 0
      %s15 = sshll.u32 %s0, 4
      %s16 = int_to_ptr.hbm [resolvable:$true] %s15
      %s17 = sshll.u32 [#allocation2], 4
      %s18 = int_to_ptr.vmem [resolvable:$true] %s17
      %23 = dma.hbm_to_vmem [thread:$0]  %s16, 1024, %s18, [#allocation3], 128, 128, 8
    $region5: #{tpu_custom_call.1} parent=1 // pred_fallthru
      _
    // Predicated region
    $region6: #{tpu_custom_call.1} parent=1 // pred_check
      _
    $region7: #{tpu_custom_call.1} parent=1 // pred_check_branch
      %25 = sbr.rel (0) target = $region9
    $region8: #{tpu_custom_call.1} parent=1 // pred_region
      %27 = vsyncadd [#allocation6], 0
      %s28 = sshll.u32 %s1, 4
      %s29 = int_to_ptr.hbm [resolvable:$true] %s28
      %s30 = sshll.u32 [#allocation5], 4
      %s31 = int_to_ptr.vmem [resolvable:$true] %s30
      %36 = dma.hbm_to_vmem [thread:$0]  %s29, 4096, %s31, [#allocation6], 128, 128, 8
    $region9: #{tpu_custom_call.1} parent=1 // pred_fallthru
      _
    // Predicated region
    $region10: #{tpu_custom_call.1} parent=1 // pred_check
      _
    $region11: #{tpu_custom_call.1} parent=1 // pred_check_branch
      %38 = sbr.rel (0) target = $region13
    $region12: #{tpu_custom_call.1} parent=1 // pred_region
      %40 = vsyncadd [#allocation6], 0
      %s42 = sshll.u32 %s2, 4
      %s43 = int_to_ptr.hbm [resolvable:$true] %s42
      %s44 = sshll.u32 [#allocation7], 4
      %s45 = int_to_ptr.vmem [resolvable:$true] %s44
      %47 = dma.hbm_to_vmem [thread:$0]  %s43, 128, %s45, [#allocation6]
    $region13: #{tpu_custom_call.1} parent=1 // pred_fallthru
      _
    // Predicated region
    $region14: #{tpu_custom_call.1} parent=1 // pred_check
      _
    $region15: #{tpu_custom_call.1} parent=1 // pred_check_branch
      %49 = sbr.rel (0) target = $region17
    $region16: #{tpu_custom_call.1} parent=1 // pred_region
      %51 = dma.done [#allocation3], 1024
    $region17: #{tpu_custom_call.1} parent=1 // pred_fallthru
      _
    // Predicated region
    $region18: #{tpu_custom_call.1} parent=1 // pred_check
      _
    $region19: #{tpu_custom_call.1} parent=1 // pred_check_branch
      %53 = sbr.rel (0) target = $region21
    $region20: #{tpu_custom_call.1} parent=1 // pred_region
      %55 = dma.done [#allocation6], 4096
    $region21: #{tpu_custom_call.1} parent=1 // pred_fallthru
      _
    // Predicated region
    $region22: #{tpu_custom_call.1} parent=1 // pred_check
      _
    $region23: #{tpu_custom_call.1} parent=1 // pred_check_branch
      %57 = sbr.rel (0) target = $region25
    $region24: #{tpu_custom_call.1} parent=1 // pred_region
      %59 = dma.done [#allocation6], 128
    $region25: #{tpu_custom_call.1} parent=1 // pred_fallthru
      _
    %v60 = vld [vmem:[#allocation5] sm:$0xff]
    %v61 = vld [vmem:[#allocation5 + $0x8] sm:$0xff]
    %v62 = vld [vmem:[#allocation5 + $0x10] sm:$0xff]
    %v63 = vld [vmem:[#allocation5 + $0x18] sm:$0xff]
    %v64 = vld [vmem:[#allocation5 + $0x20] sm:$0xff]
    %v65 = vld [vmem:[#allocation5 + $0x28] sm:$0xff]
    %v66 = vld [vmem:[#allocation5 + $0x30] sm:$0xff]
    %v67 = vld [vmem:[#allocation5 + $0x38] sm:$0xff]
    %v68 = vld [vmem:[#allocation5 + $0x40] sm:$0xff]
    %v69 = vld [vmem:[#allocation5 + $0x48] sm:$0xff]
    %v70 = vld [vmem:[#allocation5 + $0x50] sm:$0xff]
    %v71 = vld [vmem:[#allocation5 + $0x58] sm:$0xff]
    %v72 = vld [vmem:[#allocation5 + $0x60] sm:$0xff]
    %v73 = vld [vmem:[#allocation5 + $0x68] sm:$0xff]
    %v74 = vld [vmem:[#allocation5 + $0x70] sm:$0xff]
    %v75 = vld [vmem:[#allocation5 + $0x78] sm:$0xff]
    %v76 = vld [vmem:[#allocation5 + $0x80] sm:$0xff]
    %v77 = vld [vmem:[#allocation5 + $0x88] sm:$0xff]
    %v78 = vld [vmem:[#allocation5 + $0x90] sm:$0xff]
    %v79 = vld [vmem:[#allocation5 + $0x98] sm:$0xff]
    %v80 = vld [vmem:[#allocation5 + $0xa0] sm:$0xff]
    %v81 = vld [vmem:[#allocation5 + $0xa8] sm:$0xff]
    %v82 = vld [vmem:[#allocation5 + $0xb0] sm:$0xff]
    %v83 = vld [vmem:[#allocation5 + $0xb8] sm:$0xff]
    %v84 = vld [vmem:[#allocation5 + $0xc0] sm:$0xff]
    %v85 = vld [vmem:[#allocation5 + $0xc8] sm:$0xff]
    %v86 = vld [vmem:[#allocation5 + $0xd0] sm:$0xff]
    %v87 = vld [vmem:[#allocation5 + $0xd8] sm:$0xff]
    %v88 = vld [vmem:[#allocation5 + $0xe0] sm:$0xff]
    %v89 = vld [vmem:[#allocation5 + $0xe8] sm:$0xff]
    %v90 = vld [vmem:[#allocation5 + $0xf0] sm:$0xff]
    %v91 = vld [vmem:[#allocation5 + $0xf8] sm:$0xff]
    %v92 = vld [vmem:[#allocation7] sm:$0xff]
    %v93 = vld [vmem:[#allocation2] sm:$0xff]
    %94 = vmatpush.msra.mxu0 %v75
    %95 = vmatpush.msra.mxu0 %v74
    %96 = vmatpush.msra.mxu0 %v73
    %97 = vmatpush.msra.mxu0 %v72
    %98 = vmatpush.msra.mxu0 %v71
    %99 = vmatpush.msra.mxu0 %v70
    %100 = vmatpush.msra.mxu0 %v69
    %101 = vmatpush.msra.mxu0 %v68
    %102 = vmatpush.msra.mxu0 %v67
    %103 = vmatpush.msra.mxu0 %v66
    %104 = vmatpush.msra.mxu0 %v65
    %105 = vmatpush.msra.mxu0 %v64
    %106 = vmatpush.msra.mxu0 %v63
    %107 = vmatpush.msra.mxu0 %v62
    %108 = vmatpush.msra.mxu0 %v61
    %109 = vmatpush.msra.mxu0 %v60
    %110 = vmatmul.f32.gmra.mxu0 %v93
    %v111 = vpop.f32.mrf.mxu0
    %v112 = vadd.f32 %v92, %v111
    %113 = vdwg.mxu0
    %114 = vmatpush.msra.mxu0 %v91
    %115 = vmatpush.msra.mxu0 %v90
    %116 = vmatpush.msra.mxu0 %v89
    %117 = vmatpush.msra.mxu0 %v88
    %118 = vmatpush.msra.mxu0 %v87
    %119 = vmatpush.msra.mxu0 %v86
    %120 = vmatpush.msra.mxu0 %v85
    %121 = vmatpush.msra.mxu0 %v84
    %122 = vmatpush.msra.mxu0 %v83
    %123 = vmatpush.msra.mxu0 %v82
    %124 = vmatpush.msra.mxu0 %v81
    %125 = vmatpush.msra.mxu0 %v80
    %126 = vmatpush.msra.mxu0 %v79
    %127 = vmatpush.msra.mxu0 %v78
    %128 = vmatpush.msra.mxu0 %v77
    %129 = vmatpush.msra.mxu0 %v76
    %130 = vmatmul.f32.gmra.mxu0 0.0
    %v131 = vpop.f32.mrf.mxu0
    %v132 = vadd.f32 %v112, %v131
    %133 = vdwg.mxu0
    %v134 = vtanh.pop %v132
    %135 = vst [vmem:[#allocation8] sm:$0xff] %v134
    %s136 = scalar_lea.vmem [#allocation2], 8
    %v137 = vld [vmem:[%s136] sm:$0xff]
    %138 = vmatpush.msra.mxu0 %v75
    %139 = vmatpush.msra.mxu0 %v74
    %140 = vmatpush.msra.mxu0 %v73
    %141 = vmatpush.msra.mxu0 %v72
    %142 = vmatpush.msra.mxu0 %v71
    %143 = vmatpush.msra.mxu0 %v70
    %144 = vmatpush.msra.mxu0 %v69
    %145 = vmatpush.msra.mxu0 %v68
    %146 = vmatpush.msra.mxu0 %v67
    %147 = vmatpush.msra.mxu0 %v66
    %148 = vmatpush.msra.mxu0 %v65
    %149 = vmatpush.msra.mxu0 %v64
    %150 = vmatpush.msra.mxu0 %v63
    %151 = vmatpush.msra.mxu0 %v62
    %152 = vmatpush.msra.mxu0 %v61
    %153 = vmatpush.msra.mxu0 %v60
    %154 = vmatmul.f32.gmra.mxu0 %v137
    %v155 = vpop.f32.mrf.mxu0
    %v156 = vadd.f32 %v92, %v155
    %157 = vdwg.mxu0
    %158 = vmatpush.msra.mxu0 %v91
    %159 = vmatpush.msra.mxu0 %v90
    %160 = vmatpush.msra.mxu0 %v89
    %161 = vmatpush.msra.mxu0 %v88
    %162 = vmatpush.msra.mxu0 %v87
    %163 = vmatpush.msra.mxu0 %v86
    %164 = vmatpush.msra.mxu0 %v85
    %165 = vmatpush.msra.mxu0 %v84
    %166 = vmatpush.msra.mxu0 %v83
    %167 = vmatpush.msra.mxu0 %v82
    %168 = vmatpush.msra.mxu0 %v81
    %169 = vmatpush.msra.mxu0 %v80
    %170 = vmatpush.msra.mxu0 %v79
    %171 = vmatpush.msra.mxu0 %v78
    %172 = vmatpush.msra.mxu0 %v77
    %173 = vmatpush.msra.mxu0 %v76
    %174 = vmatmul.f32.gmra.mxu0 %v134
    %v175 = vpop.f32.mrf.mxu0
    %v176 = vadd.f32 %v156, %v175
    %177 = vdwg.mxu0
    %v178 = vtanh.pop %v176
    %s179 = scalar_lea.vmem [#allocation8], 8
    %180 = vst [vmem:[%s179] sm:$0xff] %v178
    %s181 = scalar_lea.vmem [#allocation2], 16
    %v182 = vld [vmem:[%s181] sm:$0xff]
    %183 = vmatpush.msra.mxu0 %v75
    %184 = vmatpush.msra.mxu0 %v74
    %185 = vmatpush.msra.mxu0 %v73
    %186 = vmatpush.msra.mxu0 %v72
    %187 = vmatpush.msra.mxu0 %v71
    %188 = vmatpush.msra.mxu0 %v70
    %189 = vmatpush.msra.mxu0 %v69
    %190 = vmatpush.msra.mxu0 %v68
    %191 = vmatpush.msra.mxu0 %v67
    %192 = vmatpush.msra.mxu0 %v66
    %193 = vmatpush.msra.mxu0 %v65
    %194 = vmatpush.msra.mxu0 %v64
    %195 = vmatpush.msra.mxu0 %v63
    %196 = vmatpush.msra.mxu0 %v62
    %197 = vmatpush.msra.mxu0 %v61
    %198 = vmatpush.msra.mxu0 %v60
    %199 = vmatmul.f32.gmra.mxu0 %v182
    %v200 = vpop.f32.mrf.mxu0
    %v201 = vadd.f32 %v92, %v200
    %202 = vdwg.mxu0
    %203 = vmatpush.msra.mxu0 %v91
    %204 = vmatpush.msra.mxu0 %v90
    %205 = vmatpush.msra.mxu0 %v89
    %206 = vmatpush.msra.mxu0 %v88
    %207 = vmatpush.msra.mxu0 %v87
    %208 = vmatpush.msra.mxu0 %v86
    %209 = vmatpush.msra.mxu0 %v85
    %210 = vmatpush.msra.mxu0 %v84
    %211 = vmatpush.msra.mxu0 %v83
    %212 = vmatpush.msra.mxu0 %v82
    %213 = vmatpush.msra.mxu0 %v81
    %214 = vmatpush.msra.mxu0 %v80
    %215 = vmatpush.msra.mxu0 %v79
    %216 = vmatpush.msra.mxu0 %v78
    %217 = vmatpush.msra.mxu0 %v77
    %218 = vmatpush.msra.mxu0 %v76
    %219 = vmatmul.f32.gmra.mxu0 %v178
    %v220 = vpop.f32.mrf.mxu0
    %v221 = vadd.f32 %v201, %v220
    %222 = vdwg.mxu0
    %v223 = vtanh.pop %v221
    %s224 = scalar_lea.vmem [#allocation8], 16
    %225 = vst [vmem:[%s224] sm:$0xff] %v223
    %s226 = scalar_lea.vmem [#allocation2], 24
    %v227 = vld [vmem:[%s226] sm:$0xff]
    %228 = vmatpush.msra.mxu0 %v75
    %229 = vmatpush.msra.mxu0 %v74
    %230 = vmatpush.msra.mxu0 %v73
    %231 = vmatpush.msra.mxu0 %v72
    %232 = vmatpush.msra.mxu0 %v71
    %233 = vmatpush.msra.mxu0 %v70
    %234 = vmatpush.msra.mxu0 %v69
    %235 = vmatpush.msra.mxu0 %v68
    %236 = vmatpush.msra.mxu0 %v67
    %237 = vmatpush.msra.mxu0 %v66
    %238 = vmatpush.msra.mxu0 %v65
    %239 = vmatpush.msra.mxu0 %v64
    %240 = vmatpush.msra.mxu0 %v63
    %241 = vmatpush.msra.mxu0 %v62
    %242 = vmatpush.msra.mxu0 %v61
    %243 = vmatpush.msra.mxu0 %v60
    %244 = vmatmul.f32.gmra.mxu0 %v227
    %v245 = vpop.f32.mrf.mxu0
    %v246 = vadd.f32 %v92, %v245
    %247 = vdwg.mxu0
    %248 = vmatpush.msra.mxu0 %v91
    %249 = vmatpush.msra.mxu0 %v90
    %250 = vmatpush.msra.mxu0 %v89
    %251 = vmatpush.msra.mxu0 %v88
    %252 = vmatpush.msra.mxu0 %v87
    %253 = vmatpush.msra.mxu0 %v86
    %254 = vmatpush.msra.mxu0 %v85
    %255 = vmatpush.msra.mxu0 %v84
    %256 = vmatpush.msra.mxu0 %v83
    %257 = vmatpush.msra.mxu0 %v82
    %258 = vmatpush.msra.mxu0 %v81
    %259 = vmatpush.msra.mxu0 %v80
    %260 = vmatpush.msra.mxu0 %v79
    %261 = vmatpush.msra.mxu0 %v78
    %262 = vmatpush.msra.mxu0 %v77
    %263 = vmatpush.msra.mxu0 %v76
    %264 = vmatmul.f32.gmra.mxu0 %v223
    %v265 = vpop.f32.mrf.mxu0
    %v266 = vadd.f32 %v246, %v265
    %267 = vdwg.mxu0
    %v268 = vtanh.pop %v266
    %s269 = scalar_lea.vmem [#allocation8], 24
    %270 = vst [vmem:[%s269] sm:$0xff] %v268
    %s271 = scalar_lea.vmem [#allocation2], 32
    %v272 = vld [vmem:[%s271] sm:$0xff]
    %273 = vmatpush.msra.mxu0 %v75
    %274 = vmatpush.msra.mxu0 %v74
    %275 = vmatpush.msra.mxu0 %v73
    %276 = vmatpush.msra.mxu0 %v72
    %277 = vmatpush.msra.mxu0 %v71
    %278 = vmatpush.msra.mxu0 %v70
    %279 = vmatpush.msra.mxu0 %v69
    %280 = vmatpush.msra.mxu0 %v68
    %281 = vmatpush.msra.mxu0 %v67
    %282 = vmatpush.msra.mxu0 %v66
    %283 = vmatpush.msra.mxu0 %v65
    %284 = vmatpush.msra.mxu0 %v64
    %285 = vmatpush.msra.mxu0 %v63
    %286 = vmatpush.msra.mxu0 %v62
    %287 = vmatpush.msra.mxu0 %v61
    %288 = vmatpush.msra.mxu0 %v60
    %289 = vmatmul.f32.gmra.mxu0 %v272
    %v290 = vpop.f32.mrf.mxu0
    %v291 = vadd.f32 %v92, %v290
    %292 = vdwg.mxu0
    %293 = vmatpush.msra.mxu0 %v91
    %294 = vmatpush.msra.mxu0 %v90
    %295 = vmatpush.msra.mxu0 %v89
    %296 = vmatpush.msra.mxu0 %v88
    %297 = vmatpush.msra.mxu0 %v87
    %298 = vmatpush.msra.mxu0 %v86
    %299 = vmatpush.msra.mxu0 %v85
    %300 = vmatpush.msra.mxu0 %v84
    %301 = vmatpush.msra.mxu0 %v83
    %302 = vmatpush.msra.mxu0 %v82
    %303 = vmatpush.msra.mxu0 %v81
    %304 = vmatpush.msra.mxu0 %v80
    %305 = vmatpush.msra.mxu0 %v79
    %306 = vmatpush.msra.mxu0 %v78
    %307 = vmatpush.msra.mxu0 %v77
    %308 = vmatpush.msra.mxu0 %v76
    %309 = vmatmul.f32.gmra.mxu0 %v268
    %v310 = vpop.f32.mrf.mxu0
    %v311 = vadd.f32 %v291, %v310
    %312 = vdwg.mxu0
    %v313 = vtanh.pop %v311
    %s314 = scalar_lea.vmem [#allocation8], 32
    %315 = vst [vmem:[%s314] sm:$0xff] %v313
    %s316 = scalar_lea.vmem [#allocation2], 40
    %v317 = vld [vmem:[%s316] sm:$0xff]
    %318 = vmatpush.msra.mxu0 %v75
    %319 = vmatpush.msra.mxu0 %v74
    %320 = vmatpush.msra.mxu0 %v73
    %321 = vmatpush.msra.mxu0 %v72
    %322 = vmatpush.msra.mxu0 %v71
    %323 = vmatpush.msra.mxu0 %v70
    %324 = vmatpush.msra.mxu0 %v69
    %325 = vmatpush.msra.mxu0 %v68
    %326 = vmatpush.msra.mxu0 %v67
    %327 = vmatpush.msra.mxu0 %v66
    %328 = vmatpush.msra.mxu0 %v65
    %329 = vmatpush.msra.mxu0 %v64
    %330 = vmatpush.msra.mxu0 %v63
    %331 = vmatpush.msra.mxu0 %v62
    %332 = vmatpush.msra.mxu0 %v61
    %333 = vmatpush.msra.mxu0 %v60
    %334 = vmatmul.f32.gmra.mxu0 %v317
    %v335 = vpop.f32.mrf.mxu0
    %v336 = vadd.f32 %v92, %v335
    %337 = vdwg.mxu0
    %338 = vmatpush.msra.mxu0 %v91
    %339 = vmatpush.msra.mxu0 %v90
    %340 = vmatpush.msra.mxu0 %v89
    %341 = vmatpush.msra.mxu0 %v88
    %342 = vmatpush.msra.mxu0 %v87
    %343 = vmatpush.msra.mxu0 %v86
    %344 = vmatpush.msra.mxu0 %v85
    %345 = vmatpush.msra.mxu0 %v84
    %346 = vmatpush.msra.mxu0 %v83
    %347 = vmatpush.msra.mxu0 %v82
    %348 = vmatpush.msra.mxu0 %v81
    %349 = vmatpush.msra.mxu0 %v80
    %350 = vmatpush.msra.mxu0 %v79
    %351 = vmatpush.msra.mxu0 %v78
    %352 = vmatpush.msra.mxu0 %v77
    %353 = vmatpush.msra.mxu0 %v76
    %354 = vmatmul.f32.gmra.mxu0 %v313
    %v355 = vpop.f32.mrf.mxu0
    %v356 = vadd.f32 %v336, %v355
    %357 = vdwg.mxu0
    %v358 = vtanh.pop %v356
    %s359 = scalar_lea.vmem [#allocation8], 40
    %360 = vst [vmem:[%s359] sm:$0xff] %v358
    %s361 = scalar_lea.vmem [#allocation2], 48
    %v362 = vld [vmem:[%s361] sm:$0xff]
    %363 = vmatpush.msra.mxu0 %v75
    %364 = vmatpush.msra.mxu0 %v74
    %365 = vmatpush.msra.mxu0 %v73
    %366 = vmatpush.msra.mxu0 %v72
    %367 = vmatpush.msra.mxu0 %v71
    %368 = vmatpush.msra.mxu0 %v70
    %369 = vmatpush.msra.mxu0 %v69
    %370 = vmatpush.msra.mxu0 %v68
    %371 = vmatpush.msra.mxu0 %v67
    %372 = vmatpush.msra.mxu0 %v66
    %373 = vmatpush.msra.mxu0 %v65
    %374 = vmatpush.msra.mxu0 %v64
    %375 = vmatpush.msra.mxu0 %v63
    %376 = vmatpush.msra.mxu0 %v62
    %377 = vmatpush.msra.mxu0 %v61
    %378 = vmatpush.msra.mxu0 %v60
    %379 = vmatmul.f32.gmra.mxu0 %v362
    %v380 = vpop.f32.mrf.mxu0
    %v381 = vadd.f32 %v92, %v380
    %382 = vdwg.mxu0
    %383 = vmatpush.msra.mxu0 %v91
    %384 = vmatpush.msra.mxu0 %v90
    %385 = vmatpush.msra.mxu0 %v89
    %386 = vmatpush.msra.mxu0 %v88
    %387 = vmatpush.msra.mxu0 %v87
    %388 = vmatpush.msra.mxu0 %v86
    %389 = vmatpush.msra.mxu0 %v85
    %390 = vmatpush.msra.mxu0 %v84
    %391 = vmatpush.msra.mxu0 %v83
    %392 = vmatpush.msra.mxu0 %v82
    %393 = vmatpush.msra.mxu0 %v81
    %394 = vmatpush.msra.mxu0 %v80
    %395 = vmatpush.msra.mxu0 %v79
    %396 = vmatpush.msra.mxu0 %v78
    %397 = vmatpush.msra.mxu0 %v77
    %398 = vmatpush.msra.mxu0 %v76
    %399 = vmatmul.f32.gmra.mxu0 %v358
    %v400 = vpop.f32.mrf.mxu0
    %v401 = vadd.f32 %v381, %v400
    %402 = vdwg.mxu0
    %v403 = vtanh.pop %v401
    %s404 = scalar_lea.vmem [#allocation8], 48
    %405 = vst [vmem:[%s404] sm:$0xff] %v403
    %s406 = scalar_lea.vmem [#allocation2], 56
    %v407 = vld [vmem:[%s406] sm:$0xff]
    %408 = vmatpush.msra.mxu0 %v75
    %409 = vmatpush.msra.mxu0 %v74
    %410 = vmatpush.msra.mxu0 %v73
    %411 = vmatpush.msra.mxu0 %v72
    %412 = vmatpush.msra.mxu0 %v71
    %413 = vmatpush.msra.mxu0 %v70
    %414 = vmatpush.msra.mxu0 %v69
    %415 = vmatpush.msra.mxu0 %v68
    %416 = vmatpush.msra.mxu0 %v67
    %417 = vmatpush.msra.mxu0 %v66
    %418 = vmatpush.msra.mxu0 %v65
    %419 = vmatpush.msra.mxu0 %v64
    %420 = vmatpush.msra.mxu0 %v63
    %421 = vmatpush.msra.mxu0 %v62
    %422 = vmatpush.msra.mxu0 %v61
    %423 = vmatpush.msra.mxu0 %v60
    %424 = vmatmul.f32.gmra.mxu0 %v407
    %v425 = vpop.f32.mrf.mxu0
    %v426 = vadd.f32 %v92, %v425
    %427 = vdwg.mxu0
    %428 = vmatpush.msra.mxu0 %v91
    %429 = vmatpush.msra.mxu0 %v90
    %430 = vmatpush.msra.mxu0 %v89
    %431 = vmatpush.msra.mxu0 %v88
    %432 = vmatpush.msra.mxu0 %v87
    %433 = vmatpush.msra.mxu0 %v86
    %434 = vmatpush.msra.mxu0 %v85
    %435 = vmatpush.msra.mxu0 %v84
    %436 = vmatpush.msra.mxu0 %v83
    %437 = vmatpush.msra.mxu0 %v82
    %438 = vmatpush.msra.mxu0 %v81
    %439 = vmatpush.msra.mxu0 %v80
    %440 = vmatpush.msra.mxu0 %v79
    %441 = vmatpush.msra.mxu0 %v78
    %442 = vmatpush.msra.mxu0 %v77
    %443 = vmatpush.msra.mxu0 %v76
    %444 = vmatmul.f32.gmra.mxu0 %v403
    %v445 = vpop.f32.mrf.mxu0
    %v446 = vadd.f32 %v426, %v445
    %447 = vdwg.mxu0
    %v448 = vtanh.pop %v446
    %s449 = scalar_lea.vmem [#allocation8], 56
    %450 = vst [vmem:[%s449] sm:$0xff] %v448
    // Predicated region
    $region26: #{tpu_custom_call.1} parent=1 // pred_check
      _
    $region27: #{tpu_custom_call.1} parent=1 // pred_check_branch
      %452 = sbr.rel (0) target = $region29
    $region28: #{tpu_custom_call.1} parent=1 // pred_region
      %454 = vsyncadd [#allocation4], 0
      %s455 = sshll.u32 [#allocation8], 4
      %s456 = int_to_ptr.vmem [resolvable:$true] %s455
      %s457 = sshll.u32 %s3, 4
      %s458 = int_to_ptr.hbm [resolvable:$true] %s457
      %463 = dma.vmem_to_hbm [thread:$0]  %s456, 1024, %s458, [#allocation4], 128, 128, 8
    $region29: #{tpu_custom_call.1} parent=1 // pred_fallthru
      _
    // Predicated region
    $region30: #{tpu_custom_call.1} parent=1 // pred_check
      _
    $region31: #{tpu_custom_call.1} parent=1 // pred_check_branch
      %465 = sbr.rel (0) target = $region33
    $region32: #{tpu_custom_call.1} parent=1 // pred_region
      %467 = dma.done [#allocation4], 1024
    $region33: #{tpu_custom_call.1} parent=1 // pred_fallthru
      _
    %468 = vsyncpa [#allocation3], 1
    %469 = vsyncpa [#allocation6], 1
    %470 = vsyncpa [#allocation4], 1

</llo_original>
